<compile_context>
chip_gen: v7x
topology: tpu7x:2x2x1
jax: 0.10.0
libtpu: 0.0.40
codegen_flags: <defaults>
</compile_context>

<pallas_src>
from functools import partial

import jax
import jax.numpy as jnp
from jax.experimental import pallas as pl
from jax.experimental.pallas import tpu as pltpu


def _attn_kernel(x_ref, o_ref, *, scale, n_heads, batch):
    """Single-invocation attention over all (head, batch) pairs.

    x_ref: (H*B, S, D) f32 -- q == k == v (the module repeats x for q/k/v).
    o_ref: (H, S, B*D) f32 -- row-major identical to attention.transpose(1, 2).
    """
    H, B = n_heads, batch
    _, S, D = x_ref.shape

    x = x_ref[...]                               # (H*B, S, D) f32, already in VMEM
    xb = x.astype(jnp.bfloat16)                  # bf16 MXU operands, f32 accumulate

    # scores[n, s, t] = sum_d x[n, s, d] * x[n, t, d]  (contract last dims; no .T)
    scores = jnp.einsum("nsd,ntd->nst", xb, xb,
                        preferred_element_type=jnp.float32)       # (H*B, S, S) f32

    # Numerically-stable softmax of (scores * scale) over the last axis.
    # scale > 0, so the row max commutes and the scale rides on the shift subtract.
    m = jnp.max(scores, axis=-1, keepdims=True)
    e = jnp.exp((scores - m) * scale)
    denom = jnp.sum(e, axis=-1, keepdims=True)
    p = e * pl.reciprocal(denom, approx=True)    # EUP slot; denom is tiny anyway

    # att[n, s, d] = sum_t p[n, s, t] * x[n, t, d]
    att = jnp.einsum("nst,ntd->nsd", p.astype(jnp.bfloat16), xb,
                     preferred_element_type=jnp.float32)          # (H*B, S, D) f32

    # Assemble the PyTorch output order (h, s, b, d) as one (H, S, B*D) slab in
    # registers and store it once (single store instead of B masked partial stores).
    att4 = att.reshape(H, B, S, D)               # leading-dim split: free
    slab = jnp.concatenate([att4[:, b] for b in range(B)], axis=-1)  # (H, S, B*D)
    o_ref[...] = slab.astype(o_ref.dtype)


def attention_forward(x, *, embedding_size, query_size, n_heads):
    B, S, E = x.shape
    assert E == embedding_size, "embedding_size must match last dim of x"
    assert E % n_heads == 0
    H = n_heads
    D = E // H

    # q = k = v = raw row-major reinterpretation of x as (H*B, S, D)  (free reshape)
    qkv = x.astype(jnp.float32).reshape(H * B, S, D)
    scale = 1.0 / (float(query_size) ** 0.5)

    out = pl.pallas_call(
        partial(_attn_kernel, scale=scale, n_heads=H, batch=B),
        out_shape=jax.ShapeDtypeStruct((H, S, B * D), jnp.float32),
        in_specs=[pl.BlockSpec(memory_space=pltpu.MemorySpace.VMEM)],
        out_specs=pl.BlockSpec(memory_space=pltpu.MemorySpace.VMEM),
    )(qkv)

    # (H, S, B*D) flattens row-major exactly like attention.transpose(1, 2), so the
    # final view(-1, E) is a pure (copy-free) reshape -- no XLA transpose kernel.
    return out.reshape(-1, embedding_size)


def _reference(x, *, embedding_size, query_size, n_heads):
    """Plain-JAX (f32) replica of the PyTorch forward, for verification."""
    B, S, E = x.shape
    D = E // n_heads
    r = x.reshape(n_heads, B, S, D)
    scores = jnp.einsum("hbsd,hbtd->hbst", r, r) / (float(query_size) ** 0.5)
    p = jax.nn.softmax(scores, axis=-1)
    att = jnp.einsum("hbst,hbtd->hbsd", p, r)
    return jnp.transpose(att, (0, 2, 1, 3)).reshape(-1, embedding_size)


if __name__ == "__main__":
    # Module hyper-parameters (deterministic, in-script; no checkpoint load).
    embedding_size = 32
    query_size = 8          # d_k used only for the 1/sqrt(d_k) scaling
    n_heads = 4
    B, S = 2, 8

    key = jax.random.PRNGKey(0)
    x = jax.random.normal(key, (B, S, embedding_size), dtype=jnp.float32)

    out = attention_forward(
        x, embedding_size=embedding_size, query_size=query_size, n_heads=n_heads)
    out = jax.block_until_ready(out)

    ref = _reference(
        x, embedding_size=embedding_size, query_size=query_size, n_heads=n_heads)

    assert out.shape == (B * S, embedding_size), out.shape
    # Tolerance covers bf16 MXU operands (kernel) vs f32 reference, plus the
    # approximate (EUP) reciprocal used for the softmax denominator.
    assert jnp.allclose(out, ref, rtol=3e-2, atol=3e-2), "mismatch vs reference"

    print("KERNEL_OK")
</pallas_src>

<mosaic_0001>
module attributes {stable_mosaic.version = 11 : i64} {
  func.func @_attn_kernel(%arg0: memref<8x8x8xf32, #tpu.memory_space<vmem>>, %arg1: memref<4x8x16xf32, #tpu.memory_space<vmem>>) attributes {dimension_semantics = [], scalar_prefetch = 0 : i64, scratch_operands = 0 : i64, tpu.core_type = #tpu.core_type<tc>} {
    %c0 = arith.constant 0 : index
    %c0_0 = arith.constant 0 : index
    %c0_1 = arith.constant 0 : index
    %0 = vector.load %arg0[%c0, %c0_0, %c0_1] : memref<8x8x8xf32, #tpu.memory_space<vmem>>, vector<8x8x8xf32>
    %1 = arith.truncf %0 : vector<8x8x8xf32> to vector<8x8x8xbf16>
    "tpu.trace_start"() <{level = 10 : i32, message = "nsd,ntd->nst"}> : () -> ()
    %cst = arith.constant dense<0.000000e+00> : vector<8x8x8xf32>
    %2 = tpu.matmul %1, %1, %cst {dimension_numbers = #tpu.dot_dimension_numbers<[2], [2], [1], [1], [0, 0, 0, 1, 1, 1], [0], [0]>} : vector<8x8x8xbf16>, vector<8x8x8xbf16>, vector<8x8x8xf32> -> vector<8x8x8xf32>
    "tpu.trace_stop"() : () -> ()
    %cst_2 = arith.constant dense<0xFF800000> : vector<8x8xf32>
    %3 = vector.multi_reduction <maximumf>, %2, %cst_2 [2] : vector<8x8x8xf32> to vector<8x8xf32>
    %4 = vector.shape_cast %3 : vector<8x8xf32> to vector<8x8x1xf32>
    %5 = vector.broadcast %4 : vector<8x8x1xf32> to vector<8x8x8xf32>
    %6 = arith.subf %2, %5 : vector<8x8x8xf32>
    %cst_3 = arith.constant 0.353553385 : f32
    %7 = vector.broadcast %cst_3 : f32 to vector<8x8x8xf32>
    %8 = arith.mulf %6, %7 : vector<8x8x8xf32>
    %9 = math.exp %8 : vector<8x8x8xf32>
    %cst_4 = arith.constant dense<0.000000e+00> : vector<8x8xf32>
    %10 = vector.multi_reduction <add>, %9, %cst_4 [2] : vector<8x8x8xf32> to vector<8x8xf32>
    %11 = vector.shape_cast %10 : vector<8x8xf32> to vector<8x8x1xf32>
    %12 = tpu.reciprocal %11 {approx = true} : vector<8x8x1xf32> -> vector<8x8x1xf32>
    %13 = vector.broadcast %12 : vector<8x8x1xf32> to vector<8x8x8xf32>
    %14 = arith.mulf %9, %13 : vector<8x8x8xf32>
    %15 = arith.truncf %14 : vector<8x8x8xf32> to vector<8x8x8xbf16>
    "tpu.trace_start"() <{level = 10 : i32, message = "nst,ntd->nsd"}> : () -> ()
    %cst_5 = arith.constant dense<0.000000e+00> : vector<8x8x8xf32>
    %16 = tpu.matmul %15, %1, %cst_5 {dimension_numbers = #tpu.dot_dimension_numbers<[2], [1], [1], [2], [0, 0, 0, 1, 1, 2], [0], [0]>} : vector<8x8x8xbf16>, vector<8x8x8xbf16>, vector<8x8x8xf32> -> vector<8x8x8xf32>
    "tpu.trace_stop"() : () -> ()
    %17 = vector.shape_cast %16 : vector<8x8x8xf32> to vector<4x2x8x8xf32>
    %18 = vector.extract_strided_slice %17 {offsets = [0, 0, 0, 0], sizes = [4, 1, 8, 8], strides = [1, 1, 1, 1]} : vector<4x2x8x8xf32> to vector<4x1x8x8xf32>
    %19 = vector.shape_cast %18 : vector<4x1x8x8xf32> to vector<4x8x8xf32>
    %20 = vector.extract_strided_slice %17 {offsets = [0, 1, 0, 0], sizes = [4, 1, 8, 8], strides = [1, 1, 1, 1]} : vector<4x2x8x8xf32> to vector<4x1x8x8xf32>
    %21 = vector.shape_cast %20 : vector<4x1x8x8xf32> to vector<4x8x8xf32>
    %22 = tpu.concatenate %19, %21 in 2 : vector<4x8x8xf32>, vector<4x8x8xf32> -> vector<4x8x16xf32>
    %c0_6 = arith.constant 0 : index
    %c0_7 = arith.constant 0 : index
    %c0_8 = arith.constant 0 : index
    %23 = vector.load %arg1[%c0_6, %c0_7, %c0_8] : memref<4x8x16xf32, #tpu.memory_space<vmem>>, vector<4x8x16xf32>
    tpu.vector_store %arg1[%c0_6, %c0_7, %c0_8], %22 {strides = array<i32>} : memref<4x8x16xf32, #tpu.memory_space<vmem>>, vector<4x8x16xf32>,
    return
  }
}

</mosaic_0001>

<llo_original>
// kernel: tpu_custom_call.1
$region0: #{tpu_custom_call.1}
  #allocation0 [shape = 'u32[]', space=smem, size = 0x4, offset = 0x4, fixed_abs, tag = 'smem constant byte address 0x4 - core index']
  #allocation1 [shape = 'u32[144,128]{1,0:T(1,128)}', space=vmem, size = 0x12000, scoped, tag = 'internal scratch']
  %s0 = inlined_call_operand.hbm [shape: f32[8,8,8], index: 0, kind: input, shape index: {}]
  %s1 = inlined_call_operand.hbm [shape: f32[4,8,16], index: 1, kind: output, shape index: {}]
  %s2 = sld [smem:[#allocation0]]
  $region18: #{tpu_custom_call.1} parent=0
    _
  %s4 = ssub.s32 1, %s2
  %s5 = scalar_select 0, %s4, %s2
  $region1: #{tpu_custom_call.1} parent=0
    #allocation2 [shape = 'u8[32768]{0}', space=vmem, size = 0x8000, scoped, tag = 'input window, operand 0, single buffered']
    #allocation3 [shape = 's32[1]{0}', space=sflag, size = 0x4, scoped, tag = 'scoped memory for tpu_custom_call.1']
    #allocation4 [shape = 's32[1]{0}', space=sflag, size = 0x4, scoped, tag = 'scoped memory for tpu_custom_call.1']
    #allocation5 [shape = 'u8[16384]{0}', space=vmem, size = 0x4000, scoped, tag = 'output window, operand 0, single buffered']
    %6 = vsyncpa [#allocation3], 0
    %7 = vsyncpa [#allocation4], 0
    // Predicated region
    $region2: #{tpu_custom_call.1} parent=1 // pred_check
      _
    $region3: #{tpu_custom_call.1} parent=1 // pred_check_branch
      %9 = sbr.rel (0) target = $region5
    $region4: #{tpu_custom_call.1} parent=1 // pred_region
      %s11 = ssub.s32 1024, 1024
      %12 = vsyncadd [#allocation3], %s11
      %s13 = sshll.u32 [#allocation2], 4
      %s14 = int_to_ptr.vmem [resolvable:$true] %s13
      %19 = dma.hbm_to_vmem [thread:$0]  %s0, 1024, %s14, [#allocation3], 128, 128, 8
    $region5: #{tpu_custom_call.1} parent=1 // pred_fallthru
      _
    // Predicated region
    $region6: #{tpu_custom_call.1} parent=1 // pred_check
      _
    $region7: #{tpu_custom_call.1} parent=1 // pred_check_branch
      %21 = sbr.rel (0) target = $region9
    $region8: #{tpu_custom_call.1} parent=1 // pred_region
      %22 = dma.done [#allocation3], 1024
    $region9: #{tpu_custom_call.1} parent=1 // pred_fallthru
      _
    %v24 = vld [vmem:[#allocation2] sm:$0xff]
    %v25 = vld [vmem:[#allocation2 + $0x8] sm:$0xff]
    %v26 = vld [vmem:[#allocation2 + $0x10] sm:$0xff]
    %v27 = vld [vmem:[#allocation2 + $0x18] sm:$0xff]
    %v28 = vld [vmem:[#allocation2 + $0x20] sm:$0xff]
    %v29 = vld [vmem:[#allocation2 + $0x28] sm:$0xff]
    %v30 = vld [vmem:[#allocation2 + $0x30] sm:$0xff]
    %v31 = vld [vmem:[#allocation2 + $0x38] sm:$0xff]
    %v32 = vpack.c.bf16 %v24, %v24
    %v33 = vpack.c.bf16 %v25, %v25
    %v34 = vpack.c.bf16 %v26, %v26
    %v35 = vpack.c.bf16 %v27, %v27
    %v36 = vpack.c.bf16 %v28, %v28
    %v37 = vpack.c.bf16 %v29, %v29
    %v38 = vpack.c.bf16 %v30, %v30
    %v39 = vpack.c.bf16 %v31, %v31
    %vm40 = vcmask 64512
    %v42 = vsel %vm40, %v32, 0
    %44 = vmatprep.subr.bf16.mxu0 0
    %45 = vmatpush1.bf16.xpose.msra.mxu0 %v42
    %46 = vmatprep.subr.bf16.mxu0 0
    %47 = vmatpush1.bf16.xpose.msra.mxu0 0
    %48 = vmatprep.subr.bf16.mxu0 0
    %49 = vmatpush1.bf16.xpose.msra.mxu0 0
    %50 = vmatprep.subr.bf16.mxu0 0
    %51 = vmatpush1.bf16.xpose.msra.mxu0 0
    %52 = vmatprep.subr.bf16.mxu0 0
    %53 = vmatpush1.bf16.xpose.msra.mxu0 0
    %54 = vmatprep.subr.bf16.mxu0 0
    %55 = vmatpush1.bf16.xpose.msra.mxu0 0
    %56 = vmatprep.subr.bf16.mxu0 0
    %57 = vmatpush1.bf16.xpose.msra.mxu0 0
    %58 = vmatprep.subr.bf16.mxu0 0
    %59 = vmatpush1.bf16.xpose.msra.mxu0 0
    %60 = vmatprep.subr.bf16.mxu0 0
    %61 = vmatpush1.bf16.xpose.msra.mxu0 0
    %62 = vmatprep.subr.bf16.mxu0 0
    %63 = vmatpush1.bf16.xpose.msra.mxu0 0
    %64 = vmatprep.subr.bf16.mxu0 0
    %65 = vmatpush1.bf16.xpose.msra.mxu0 0
    %66 = vmatprep.subr.bf16.mxu0 0
    %67 = vmatpush1.bf16.xpose.msra.mxu0 0
    %68 = vmatprep.subr.bf16.mxu0 0
    %69 = vmatpush1.bf16.xpose.msra.mxu0 0
    %70 = vmatprep.subr.bf16.mxu0 0
    %71 = vmatpush1.bf16.xpose.msra.mxu0 0
    %72 = vmatprep.subr.bf16.mxu0 0
    %73 = vmatpush1.bf16.xpose.msra.mxu0 0
    %74 = vmatprep.subr.bf16.mxu0 0
    %75 = vmatpush1.bf16.xpose.msra.mxu0 0
    %76 = vmatprep.mubr.bf16.mxu0 0
    %77 = vmatmul.mubr.bf16.gmra.mrb[0].mxu0 %v42
    %v78 = vpop.f32.mrb[0].mxu0
    %v79 = vadd.f32 0.0, %v78
    %v80 = vpop.f32.mrb[0].mxu0
    %v81 = vpop.f32.mrb[0].mxu0
    %v82 = vpop.f32.mrb[0].mxu0
    %83 = vdwg.mxu0
    %v85 = vsel %vm40, %v33, 0
    %87 = vmatprep.subr.bf16.mxu0 0
    %88 = vmatpush1.bf16.xpose.msra.mxu0 %v85
    %89 = vmatprep.subr.bf16.mxu0 0
    %90 = vmatpush1.bf16.xpose.msra.mxu0 0
    %91 = vmatprep.subr.bf16.mxu0 0
    %92 = vmatpush1.bf16.xpose.msra.mxu0 0
    %93 = vmatprep.subr.bf16.mxu0 0
    %94 = vmatpush1.bf16.xpose.msra.mxu0 0
    %95 = vmatprep.subr.bf16.mxu0 0
    %96 = vmatpush1.bf16.xpose.msra.mxu0 0
    %97 = vmatprep.subr.bf16.mxu0 0
    %98 = vmatpush1.bf16.xpose.msra.mxu0 0
    %99 = vmatprep.subr.bf16.mxu0 0
    %100 = vmatpush1.bf16.xpose.msra.mxu0 0
    %101 = vmatprep.subr.bf16.mxu0 0
    %102 = vmatpush1.bf16.xpose.msra.mxu0 0
    %103 = vmatprep.subr.bf16.mxu0 0
    %104 = vmatpush1.bf16.xpose.msra.mxu0 0
    %105 = vmatprep.subr.bf16.mxu0 0
    %106 = vmatpush1.bf16.xpose.msra.mxu0 0
    %107 = vmatprep.subr.bf16.mxu0 0
    %108 = vmatpush1.bf16.xpose.msra.mxu0 0
    %109 = vmatprep.subr.bf16.mxu0 0
    %110 = vmatpush1.bf16.xpose.msra.mxu0 0
    %111 = vmatprep.subr.bf16.mxu0 0
    %112 = vmatpush1.bf16.xpose.msra.mxu0 0
    %113 = vmatprep.subr.bf16.mxu0 0
    %114 = vmatpush1.bf16.xpose.msra.mxu0 0
    %115 = vmatprep.subr.bf16.mxu0 0
    %116 = vmatpush1.bf16.xpose.msra.mxu0 0
    %117 = vmatprep.subr.bf16.mxu0 0
    %118 = vmatpush1.bf16.xpose.msra.mxu0 0
    %119 = vmatprep.mubr.bf16.mxu0 0
    %120 = vmatmul.mubr.bf16.gmra.mrb[0].mxu0 %v85
    %v121 = vpop.f32.mrb[0].mxu0
    %v122 = vadd.f32 0.0, %v121
    %v123 = vpop.f32.mrb[0].mxu0
    %v124 = vpop.f32.mrb[0].mxu0
    %v125 = vpop.f32.mrb[0].mxu0
    %126 = vdwg.mxu0
    %v128 = vsel %vm40, %v34, 0
    %130 = vmatprep.subr.bf16.mxu0 0
    %131 = vmatpush1.bf16.xpose.msra.mxu0 %v128
    %132 = vmatprep.subr.bf16.mxu0 0
    %133 = vmatpush1.bf16.xpose.msra.mxu0 0
    %134 = vmatprep.subr.bf16.mxu0 0
    %135 = vmatpush1.bf16.xpose.msra.mxu0 0
    %136 = vmatprep.subr.bf16.mxu0 0
    %137 = vmatpush1.bf16.xpose.msra.mxu0 0
    %138 = vmatprep.subr.bf16.mxu0 0
    %139 = vmatpush1.bf16.xpose.msra.mxu0 0
    %140 = vmatprep.subr.bf16.mxu0 0
    %141 = vmatpush1.bf16.xpose.msra.mxu0 0
    %142 = vmatprep.subr.bf16.mxu0 0
    %143 = vmatpush1.bf16.xpose.msra.mxu0 0
    %144 = vmatprep.subr.bf16.mxu0 0
    %145 = vmatpush1.bf16.xpose.msra.mxu0 0
    %146 = vmatprep.subr.bf16.mxu0 0
    %147 = vmatpush1.bf16.xpose.msra.mxu0 0
    %148 = vmatprep.subr.bf16.mxu0 0
    %149 = vmatpush1.bf16.xpose.msra.mxu0 0
    %150 = vmatprep.subr.bf16.mxu0 0
    %151 = vmatpush1.bf16.xpose.msra.mxu0 0
    %152 = vmatprep.subr.bf16.mxu0 0
    %153 = vmatpush1.bf16.xpose.msra.mxu0 0
    %154 = vmatprep.subr.bf16.mxu0 0
    %155 = vmatpush1.bf16.xpose.msra.mxu0 0
    %156 = vmatprep.subr.bf16.mxu0 0
    %157 = vmatpush1.bf16.xpose.msra.mxu0 0
    %158 = vmatprep.subr.bf16.mxu0 0
    %159 = vmatpush1.bf16.xpose.msra.mxu0 0
    %160 = vmatprep.subr.bf16.mxu0 0
    %161 = vmatpush1.bf16.xpose.msra.mxu0 0
    %162 = vmatprep.mubr.bf16.mxu0 0
    %163 = vmatmul.mubr.bf16.gmra.mrb[0].mxu0 %v128
    %v164 = vpop.f32.mrb[0].mxu0
    %v165 = vadd.f32 0.0, %v164
    %v166 = vpop.f32.mrb[0].mxu0
    %v167 = vpop.f32.mrb[0].mxu0
    %v168 = vpop.f32.mrb[0].mxu0
    %169 = vdwg.mxu0
    %v171 = vsel %vm40, %v35, 0
    %173 = vmatprep.subr.bf16.mxu0 0
    %174 = vmatpush1.bf16.xpose.msra.mxu0 %v171
    %175 = vmatprep.subr.bf16.mxu0 0
    %176 = vmatpush1.bf16.xpose.msra.mxu0 0
    %177 = vmatprep.subr.bf16.mxu0 0
    %178 = vmatpush1.bf16.xpose.msra.mxu0 0
    %179 = vmatprep.subr.bf16.mxu0 0
    %180 = vmatpush1.bf16.xpose.msra.mxu0 0
    %181 = vmatprep.subr.bf16.mxu0 0
    %182 = vmatpush1.bf16.xpose.msra.mxu0 0
    %183 = vmatprep.subr.bf16.mxu0 0
    %184 = vmatpush1.bf16.xpose.msra.mxu0 0
    %185 = vmatprep.subr.bf16.mxu0 0
    %186 = vmatpush1.bf16.xpose.msra.mxu0 0
    %187 = vmatprep.subr.bf16.mxu0 0
    %188 = vmatpush1.bf16.xpose.msra.mxu0 0
    %189 = vmatprep.subr.bf16.mxu0 0
    %190 = vmatpush1.bf16.xpose.msra.mxu0 0
    %191 = vmatprep.subr.bf16.mxu0 0
    %192 = vmatpush1.bf16.xpose.msra.mxu0 0
    %193 = vmatprep.subr.bf16.mxu0 0
    %194 = vmatpush1.bf16.xpose.msra.mxu0 0
    %195 = vmatprep.subr.bf16.mxu0 0
    %196 = vmatpush1.bf16.xpose.msra.mxu0 0
    %197 = vmatprep.subr.bf16.mxu0 0
    %198 = vmatpush1.bf16.xpose.msra.mxu0 0
    %199 = vmatprep.subr.bf16.mxu0 0
    %200 = vmatpush1.bf16.xpose.msra.mxu0 0
    %201 = vmatprep.subr.bf16.mxu0 0
    %202 = vmatpush1.bf16.xpose.msra.mxu0 0
    %203 = vmatprep.subr.bf16.mxu0 0
    %204 = vmatpush1.bf16.xpose.msra.mxu0 0
    %205 = vmatprep.mubr.bf16.mxu0 0
    %206 = vmatmul.mubr.bf16.gmra.mrb[0].mxu0 %v171
    %v207 = vpop.f32.mrb[0].mxu0
    %v208 = vadd.f32 0.0, %v207
    %v209 = vpop.f32.mrb[0].mxu0
    %v210 = vpop.f32.mrb[0].mxu0
    %v211 = vpop.f32.mrb[0].mxu0
    %212 = vdwg.mxu0
    %v214 = vsel %vm40, %v36, 0
    %216 = vmatprep.subr.bf16.mxu0 0
    %217 = vmatpush1.bf16.xpose.msra.mxu0 %v214
    %218 = vmatprep.subr.bf16.mxu0 0
    %219 = vmatpush1.bf16.xpose.msra.mxu0 0
    %220 = vmatprep.subr.bf16.mxu0 0
    %221 = vmatpush1.bf16.xpose.msra.mxu0 0
    %222 = vmatprep.subr.bf16.mxu0 0
    %223 = vmatpush1.bf16.xpose.msra.mxu0 0
    %224 = vmatprep.subr.bf16.mxu0 0
    %225 = vmatpush1.bf16.xpose.msra.mxu0 0
    %226 = vmatprep.subr.bf16.mxu0 0
    %227 = vmatpush1.bf16.xpose.msra.mxu0 0
    %228 = vmatprep.subr.bf16.mxu0 0
    %229 = vmatpush1.bf16.xpose.msra.mxu0 0
    %230 = vmatprep.subr.bf16.mxu0 0
    %231 = vmatpush1.bf16.xpose.msra.mxu0 0
    %232 = vmatprep.subr.bf16.mxu0 0
    %233 = vmatpush1.bf16.xpose.msra.mxu0 0
    %234 = vmatprep.subr.bf16.mxu0 0
    %235 = vmatpush1.bf16.xpose.msra.mxu0 0
    %236 = vmatprep.subr.bf16.mxu0 0
    %237 = vmatpush1.bf16.xpose.msra.mxu0 0
    %238 = vmatprep.subr.bf16.mxu0 0
    %239 = vmatpush1.bf16.xpose.msra.mxu0 0
    %240 = vmatprep.subr.bf16.mxu0 0
    %241 = vmatpush1.bf16.xpose.msra.mxu0 0
    %242 = vmatprep.subr.bf16.mxu0 0
    %243 = vmatpush1.bf16.xpose.msra.mxu0 0
    %244 = vmatprep.subr.bf16.mxu0 0
    %245 = vmatpush1.bf16.xpose.msra.mxu0 0
    %246 = vmatprep.subr.bf16.mxu0 0
    %247 = vmatpush1.bf16.xpose.msra.mxu0 0
    %248 = vmatprep.mubr.bf16.mxu0 0
    %249 = vmatmul.mubr.bf16.gmra.mrb[0].mxu0 %v214
    %v250 = vpop.f32.mrb[0].mxu0
    %v251 = vadd.f32 0.0, %v250
    %v252 = vpop.f32.mrb[0].mxu0
    %v253 = vpop.f32.mrb[0].mxu0
    %v254 = vpop.f32.mrb[0].mxu0
    %255 = vdwg.mxu0
    %v257 = vsel %vm40, %v37, 0
    %259 = vmatprep.subr.bf16.mxu0 0
    %260 = vmatpush1.bf16.xpose.msra.mxu0 %v257
    %261 = vmatprep.subr.bf16.mxu0 0
    %262 = vmatpush1.bf16.xpose.msra.mxu0 0
    %263 = vmatprep.subr.bf16.mxu0 0
    %264 = vmatpush1.bf16.xpose.msra.mxu0 0
    %265 = vmatprep.subr.bf16.mxu0 0
    %266 = vmatpush1.bf16.xpose.msra.mxu0 0
    %267 = vmatprep.subr.bf16.mxu0 0
    %268 = vmatpush1.bf16.xpose.msra.mxu0 0
    %269 = vmatprep.subr.bf16.mxu0 0
    %270 = vmatpush1.bf16.xpose.msra.mxu0 0
    %271 = vmatprep.subr.bf16.mxu0 0
    %272 = vmatpush1.bf16.xpose.msra.mxu0 0
    %273 = vmatprep.subr.bf16.mxu0 0
    %274 = vmatpush1.bf16.xpose.msra.mxu0 0
    %275 = vmatprep.subr.bf16.mxu0 0
    %276 = vmatpush1.bf16.xpose.msra.mxu0 0
    %277 = vmatprep.subr.bf16.mxu0 0
    %278 = vmatpush1.bf16.xpose.msra.mxu0 0
    %279 = vmatprep.subr.bf16.mxu0 0
    %280 = vmatpush1.bf16.xpose.msra.mxu0 0
    %281 = vmatprep.subr.bf16.mxu0 0
    %282 = vmatpush1.bf16.xpose.msra.mxu0 0
    %283 = vmatprep.subr.bf16.mxu0 0
    %284 = vmatpush1.bf16.xpose.msra.mxu0 0
    %285 = vmatprep.subr.bf16.mxu0 0
    %286 = vmatpush1.bf16.xpose.msra.mxu0 0
    %287 = vmatprep.subr.bf16.mxu0 0
    %288 = vmatpush1.bf16.xpose.msra.mxu0 0
    %289 = vmatprep.subr.bf16.mxu0 0
    %290 = vmatpush1.bf16.xpose.msra.mxu0 0
    %291 = vmatprep.mubr.bf16.mxu0 0
    %292 = vmatmul.mubr.bf16.gmra.mrb[0].mxu0 %v257
    %v293 = vpop.f32.mrb[0].mxu0
    %v294 = vadd.f32 0.0, %v293
    %v295 = vpop.f32.mrb[0].mxu0
    %v296 = vpop.f32.mrb[0].mxu0
    %v297 = vpop.f32.mrb[0].mxu0
    %298 = vdwg.mxu0
    %v300 = vsel %vm40, %v38, 0
    %302 = vmatprep.subr.bf16.mxu0 0
    %303 = vmatpush1.bf16.xpose.msra.mxu0 %v300
    %304 = vmatprep.subr.bf16.mxu0 0
    %305 = vmatpush1.bf16.xpose.msra.mxu0 0
    %306 = vmatprep.subr.bf16.mxu0 0
    %307 = vmatpush1.bf16.xpose.msra.mxu0 0
    %308 = vmatprep.subr.bf16.mxu0 0
    %309 = vmatpush1.bf16.xpose.msra.mxu0 0
    %310 = vmatprep.subr.bf16.mxu0 0
    %311 = vmatpush1.bf16.xpose.msra.mxu0 0
    %312 = vmatprep.subr.bf16.mxu0 0
    %313 = vmatpush1.bf16.xpose.msra.mxu0 0
    %314 = vmatprep.subr.bf16.mxu0 0
    %315 = vmatpush1.bf16.xpose.msra.mxu0 0
    %316 = vmatprep.subr.bf16.mxu0 0
    %317 = vmatpush1.bf16.xpose.msra.mxu0 0
    %318 = vmatprep.subr.bf16.mxu0 0
    %319 = vmatpush1.bf16.xpose.msra.mxu0 0
    %320 = vmatprep.subr.bf16.mxu0 0
    %321 = vmatpush1.bf16.xpose.msra.mxu0 0
    %322 = vmatprep.subr.bf16.mxu0 0
    %323 = vmatpush1.bf16.xpose.msra.mxu0 0
    %324 = vmatprep.subr.bf16.mxu0 0
    %325 = vmatpush1.bf16.xpose.msra.mxu0 0
    %326 = vmatprep.subr.bf16.mxu0 0
    %327 = vmatpush1.bf16.xpose.msra.mxu0 0
    %328 = vmatprep.subr.bf16.mxu0 0
    %329 = vmatpush1.bf16.xpose.msra.mxu0 0
    %330 = vmatprep.subr.bf16.mxu0 0
    %331 = vmatpush1.bf16.xpose.msra.mxu0 0
    %332 = vmatprep.subr.bf16.mxu0 0
    %333 = vmatpush1.bf16.xpose.msra.mxu0 0
    %334 = vmatprep.mubr.bf16.mxu0 0
    %335 = vmatmul.mubr.bf16.gmra.mrb[0].mxu0 %v300
    %v336 = vpop.f32.mrb[0].mxu0
    %v337 = vadd.f32 0.0, %v336
    %v338 = vpop.f32.mrb[0].mxu0
    %v339 = vpop.f32.mrb[0].mxu0
    %v340 = vpop.f32.mrb[0].mxu0
    %341 = vdwg.mxu0
    %v343 = vsel %vm40, %v39, 0
    %345 = vmatprep.subr.bf16.mxu0 0
    %346 = vmatpush1.bf16.xpose.msra.mxu0 %v343
    %347 = vmatprep.subr.bf16.mxu0 0
    %348 = vmatpush1.bf16.xpose.msra.mxu0 0
    %349 = vmatprep.subr.bf16.mxu0 0
    %350 = vmatpush1.bf16.xpose.msra.mxu0 0
    %351 = vmatprep.subr.bf16.mxu0 0
    %352 = vmatpush1.bf16.xpose.msra.mxu0 0
    %353 = vmatprep.subr.bf16.mxu0 0
    %354 = vmatpush1.bf16.xpose.msra.mxu0 0
    %355 = vmatprep.subr.bf16.mxu0 0
    %356 = vmatpush1.bf16.xpose.msra.mxu0 0
    %357 = vmatprep.subr.bf16.mxu0 0
    %358 = vmatpush1.bf16.xpose.msra.mxu0 0
    %359 = vmatprep.subr.bf16.mxu0 0
    %360 = vmatpush1.bf16.xpose.msra.mxu0 0
    %361 = vmatprep.subr.bf16.mxu0 0
    %362 = vmatpush1.bf16.xpose.msra.mxu0 0
    %363 = vmatprep.subr.bf16.mxu0 0
    %364 = vmatpush1.bf16.xpose.msra.mxu0 0
    %365 = vmatprep.subr.bf16.mxu0 0
    %366 = vmatpush1.bf16.xpose.msra.mxu0 0
    %367 = vmatprep.subr.bf16.mxu0 0
    %368 = vmatpush1.bf16.xpose.msra.mxu0 0
    %369 = vmatprep.subr.bf16.mxu0 0
    %370 = vmatpush1.bf16.xpose.msra.mxu0 0
    %371 = vmatprep.subr.bf16.mxu0 0
    %372 = vmatpush1.bf16.xpose.msra.mxu0 0
    %373 = vmatprep.subr.bf16.mxu0 0
    %374 = vmatpush1.bf16.xpose.msra.mxu0 0
    %375 = vmatprep.subr.bf16.mxu0 0
    %376 = vmatpush1.bf16.xpose.msra.mxu0 0
    %377 = vmatprep.mubr.bf16.mxu0 0
    %378 = vmatmul.mubr.bf16.gmra.mrb[0].mxu0 %v343
    %v379 = vpop.f32.mrb[0].mxu0
    %v380 = vadd.f32 0.0, %v379
    %v381 = vpop.f32.mrb[0].mxu0
    %v382 = vpop.f32.mrb[0].mxu0
    %v383 = vpop.f32.mrb[0].mxu0
    %384 = vdwg.mxu0
    %v385 = vsel %vm40, %v79, -inf
    %386 = vmax.xlane.f32.xlu0 %v385
    %v387 = vpop.xlane.xlu0 %386
    %v388 = vsel %vm40, %v122, -inf
    %389 = vmax.xlane.f32.xlu0 %v388
    %v390 = vpop.xlane.xlu0 %389
    %v391 = vsel %vm40, %v165, -inf
    %392 = vmax.xlane.f32.xlu0 %v391
    %v393 = vpop.xlane.xlu0 %392
    %v394 = vsel %vm40, %v208, -inf
    %395 = vmax.xlane.f32.xlu0 %v394
    %v396 = vpop.xlane.xlu0 %395
    %v397 = vsel %vm40, %v251, -inf
    %398 = vmax.xlane.f32.xlu0 %v397
    %v399 = vpop.xlane.xlu0 %398
    %v400 = vsel %vm40, %v294, -inf
    %401 = vmax.xlane.f32.xlu0 %v400
    %v402 = vpop.xlane.xlu0 %401
    %v403 = vsel %vm40, %v337, -inf
    %404 = vmax.xlane.f32.xlu0 %v403
    %v405 = vpop.xlane.xlu0 %404
    %v406 = vsel %vm40, %v380, -inf
    %407 = vmax.xlane.f32.xlu0 %v406
    %v408 = vpop.xlane.xlu0 %407
    %v409 = vsub.f32 %v79, %v387
    %v410 = vsub.f32 %v122, %v390
    %v411 = vsub.f32 %v165, %v393
    %v412 = vsub.f32 %v208, %v396
    %v413 = vsub.f32 %v251, %v399
    %v414 = vsub.f32 %v294, %v402
    %v415 = vsub.f32 %v337, %v405
    %v416 = vsub.f32 %v380, %v408
    %v417 = vmul.f32 %v409, 0.35355338
    %v418 = vmul.f32 %v410, 0.35355338
    %v419 = vmul.f32 %v411, 0.35355338
    %v420 = vmul.f32 %v412, 0.35355338
    %v421 = vmul.f32 %v413, 0.35355338
    %v422 = vmul.f32 %v414, 0.35355338
    %v423 = vmul.f32 %v415, 0.35355338
    %v424 = vmul.f32 %v416, 0.35355338
    %v425 = vmul.f32 %v417, 1.442695
    %v426 = vpow.pop %v425
    %v427 = vmul.f32 %v418, 1.442695
    %v428 = vpow.pop %v427
    %v429 = vmul.f32 %v419, 1.442695
    %v430 = vpow.pop %v429
    %v431 = vmul.f32 %v420, 1.442695
    %v432 = vpow.pop %v431
    %v433 = vmul.f32 %v421, 1.442695
    %v434 = vpow.pop %v433
    %v435 = vmul.f32 %v422, 1.442695
    %v436 = vpow.pop %v435
    %v437 = vmul.f32 %v423, 1.442695
    %v438 = vpow.pop %v437
    %v439 = vmul.f32 %v424, 1.442695
    %v440 = vpow.pop %v439
    %v441 = vsel %vm40, %v426, 0.0
    %442 = vadd.xlane.f32.xlu0 %v441
    %v443 = vpop.xlane.xlu0 %442
    %v444 = vsel %vm40, %v428, 0.0
    %445 = vadd.xlane.f32.xlu0 %v444
    %v446 = vpop.xlane.xlu0 %445
    %v447 = vsel %vm40, %v430, 0.0
    %448 = vadd.xlane.f32.xlu0 %v447
    %v449 = vpop.xlane.xlu0 %448
    %v450 = vsel %vm40, %v432, 0.0
    %451 = vadd.xlane.f32.xlu0 %v450
    %v452 = vpop.xlane.xlu0 %451
    %v453 = vsel %vm40, %v434, 0.0
    %454 = vadd.xlane.f32.xlu0 %v453
    %v455 = vpop.xlane.xlu0 %454
    %v456 = vsel %vm40, %v436, 0.0
    %457 = vadd.xlane.f32.xlu0 %v456
    %v458 = vpop.xlane.xlu0 %457
    %v459 = vsel %vm40, %v438, 0.0
    %460 = vadd.xlane.f32.xlu0 %v459
    %v461 = vpop.xlane.xlu0 %460
    %v462 = vsel %vm40, %v440, 0.0
    %463 = vadd.xlane.f32.xlu0 %v462
    %v464 = vpop.xlane.xlu0 %463
    %v465 = vrcp.pop %v443
    %v466 = vrcp.pop %v446
    %v467 = vrcp.pop %v449
    %v468 = vrcp.pop %v452
    %v469 = vrcp.pop %v455
    %v470 = vrcp.pop %v458
    %v471 = vrcp.pop %v461
    %v472 = vrcp.pop %v464
    %v473 = vmul.f32 %v426, %v465
    %v474 = vmul.f32 %v428, %v466
    %v475 = vmul.f32 %v430, %v467
    %v476 = vmul.f32 %v432, %v468
    %v477 = vmul.f32 %v434, %v469
    %v478 = vmul.f32 %v436, %v470
    %v479 = vmul.f32 %v438, %v471
    %v480 = vmul.f32 %v440, %v472
    %v481 = vpack.c.bf16 %v473, %v473
    %v482 = vpack.c.bf16 %v474, %v474
    %v483 = vpack.c.bf16 %v475, %v475
    %v484 = vpack.c.bf16 %v476, %v476
    %v485 = vpack.c.bf16 %v477, %v477
    %v486 = vpack.c.bf16 %v478, %v478
    %v487 = vpack.c.bf16 %v479, %v479
    %v488 = vpack.c.bf16 %v480, %v480
    %v490 = vsel %vm40, %v481, 0
    %vm492 = vcmask 1043456
    %v493 = vsel %vm492, %v32, 0
    %495 = vmatprep.subr.bf16.mxu0 0
    %496 = vmatpush1.bf16.msra.mxu0 %v493
    %497 = vmatprep.subr.bf16.mxu0 0
    %498 = vmatpush1.bf16.msra.mxu0 0
    %499 = vmatprep.subr.bf16.mxu0 0
    %500 = vmatpush1.bf16.msra.mxu0 0
    %501 = vmatprep.subr.bf16.mxu0 0
    %502 = vmatpush1.bf16.msra.mxu0 0
    %503 = vmatprep.subr.bf16.mxu0 0
    %504 = vmatpush1.bf16.msra.mxu0 0
    %505 = vmatprep.subr.bf16.mxu0 0
    %506 = vmatpush1.bf16.msra.mxu0 0
    %507 = vmatprep.subr.bf16.mxu0 0
    %508 = vmatpush1.bf16.msra.mxu0 0
    %509 = vmatprep.subr.bf16.mxu0 0
    %510 = vmatpush1.bf16.msra.mxu0 0
    %511 = vmatprep.subr.bf16.mxu0 0
    %512 = vmatpush1.bf16.msra.mxu0 0
    %513 = vmatprep.subr.bf16.mxu0 0
    %514 = vmatpush1.bf16.msra.mxu0 0
    %515 = vmatprep.subr.bf16.mxu0 0
    %516 = vmatpush1.bf16.msra.mxu0 0
    %517 = vmatprep.subr.bf16.mxu0 0
    %518 = vmatpush1.bf16.msra.mxu0 0
    %519 = vmatprep.subr.bf16.mxu0 0
    %520 = vmatpush1.bf16.msra.mxu0 0
    %521 = vmatprep.subr.bf16.mxu0 0
    %522 = vmatpush1.bf16.msra.mxu0 0
    %523 = vmatprep.subr.bf16.mxu0 0
    %524 = vmatpush1.bf16.msra.mxu0 0
    %525 = vmatprep.subr.bf16.mxu0 0
    %526 = vmatpush1.bf16.msra.mxu0 0
    %527 = vmatprep.mubr.bf16.mxu0 0
    %528 = vmatmul.mubr.bf16.gmra.mrb[0].mxu0 %v490
    %v529 = vpop.f32.mrb[0].mxu0
    %v530 = vadd.f32 0.0, %v529
    %v531 = vpop.f32.mrb[0].mxu0
    %v532 = vpop.f32.mrb[0].mxu0
    %v533 = vpop.f32.mrb[0].mxu0
    %534 = vdwg.mxu0
    %v536 = vsel %vm40, %v482, 0
    %v538 = vsel %vm492, %v33, 0
    %540 = vmatprep.subr.bf16.mxu0 0
    %541 = vmatpush1.bf16.msra.mxu0 %v538
    %542 = vmatprep.subr.bf16.mxu0 0
    %543 = vmatpush1.bf16.msra.mxu0 0
    %544 = vmatprep.subr.bf16.mxu0 0
    %545 = vmatpush1.bf16.msra.mxu0 0
    %546 = vmatprep.subr.bf16.mxu0 0
    %547 = vmatpush1.bf16.msra.mxu0 0
    %548 = vmatprep.subr.bf16.mxu0 0
    %549 = vmatpush1.bf16.msra.mxu0 0
    %550 = vmatprep.subr.bf16.mxu0 0
    %551 = vmatpush1.bf16.msra.mxu0 0
    %552 = vmatprep.subr.bf16.mxu0 0
    %553 = vmatpush1.bf16.msra.mxu0 0
    %554 = vmatprep.subr.bf16.mxu0 0
    %555 = vmatpush1.bf16.msra.mxu0 0
    %556 = vmatprep.subr.bf16.mxu0 0
    %557 = vmatpush1.bf16.msra.mxu0 0
    %558 = vmatprep.subr.bf16.mxu0 0
    %559 = vmatpush1.bf16.msra.mxu0 0
    %560 = vmatprep.subr.bf16.mxu0 0
    %561 = vmatpush1.bf16.msra.mxu0 0
    %562 = vmatprep.subr.bf16.mxu0 0
    %563 = vmatpush1.bf16.msra.mxu0 0
    %564 = vmatprep.subr.bf16.mxu0 0
    %565 = vmatpush1.bf16.msra.mxu0 0
    %566 = vmatprep.subr.bf16.mxu0 0
    %567 = vmatpush1.bf16.msra.mxu0 0
    %568 = vmatprep.subr.bf16.mxu0 0
    %569 = vmatpush1.bf16.msra.mxu0 0
    %570 = vmatprep.subr.bf16.mxu0 0
    %571 = vmatpush1.bf16.msra.mxu0 0
    %572 = vmatprep.mubr.bf16.mxu0 0
    %573 = vmatmul.mubr.bf16.gmra.mrb[0].mxu0 %v536
    %v574 = vpop.f32.mrb[0].mxu0
    %v575 = vadd.f32 0.0, %v574
    %v576 = vpop.f32.mrb[0].mxu0
    %v577 = vpop.f32.mrb[0].mxu0
    %v578 = vpop.f32.mrb[0].mxu0
    %579 = vdwg.mxu0
    %v581 = vsel %vm40, %v483, 0
    %v583 = vsel %vm492, %v34, 0
    %585 = vmatprep.subr.bf16.mxu0 0
    %586 = vmatpush1.bf16.msra.mxu0 %v583
    %587 = vmatprep.subr.bf16.mxu0 0
    %588 = vmatpush1.bf16.msra.mxu0 0
    %589 = vmatprep.subr.bf16.mxu0 0
    %590 = vmatpush1.bf16.msra.mxu0 0
    %591 = vmatprep.subr.bf16.mxu0 0
    %592 = vmatpush1.bf16.msra.mxu0 0
    %593 = vmatprep.subr.bf16.mxu0 0
    %594 = vmatpush1.bf16.msra.mxu0 0
    %595 = vmatprep.subr.bf16.mxu0 0
    %596 = vmatpush1.bf16.msra.mxu0 0
    %597 = vmatprep.subr.bf16.mxu0 0
    %598 = vmatpush1.bf16.msra.mxu0 0
    %599 = vmatprep.subr.bf16.mxu0 0
    %600 = vmatpush1.bf16.msra.mxu0 0
    %601 = vmatprep.subr.bf16.mxu0 0
    %602 = vmatpush1.bf16.msra.mxu0 0
    %603 = vmatprep.subr.bf16.mxu0 0
    %604 = vmatpush1.bf16.msra.mxu0 0
    %605 = vmatprep.subr.bf16.mxu0 0
    %606 = vmatpush1.bf16.msra.mxu0 0
    %607 = vmatprep.subr.bf16.mxu0 0
    %608 = vmatpush1.bf16.msra.mxu0 0
    %609 = vmatprep.subr.bf16.mxu0 0
    %610 = vmatpush1.bf16.msra.mxu0 0
    %611 = vmatprep.subr.bf16.mxu0 0
    %612 = vmatpush1.bf16.msra.mxu0 0
    %613 = vmatprep.subr.bf16.mxu0 0
    %614 = vmatpush1.bf16.msra.mxu0 0
    %615 = vmatprep.subr.bf16.mxu0 0
    %616 = vmatpush1.bf16.msra.mxu0 0
    %617 = vmatprep.mubr.bf16.mxu0 0
    %618 = vmatmul.mubr.bf16.gmra.mrb[0].mxu0 %v581
    %v619 = vpop.f32.mrb[0].mxu0
    %v620 = vadd.f32 0.0, %v619
    %v621 = vpop.f32.mrb[0].mxu0
    %v622 = vpop.f32.mrb[0].mxu0
    %v623 = vpop.f32.mrb[0].mxu0
    %624 = vdwg.mxu0
    %v626 = vsel %vm40, %v484, 0
    %v628 = vsel %vm492, %v35, 0
    %630 = vmatprep.subr.bf16.mxu0 0
    %631 = vmatpush1.bf16.msra.mxu0 %v628
    %632 = vmatprep.subr.bf16.mxu0 0
    %633 = vmatpush1.bf16.msra.mxu0 0
    %634 = vmatprep.subr.bf16.mxu0 0
    %635 = vmatpush1.bf16.msra.mxu0 0
    %636 = vmatprep.subr.bf16.mxu0 0
    %637 = vmatpush1.bf16.msra.mxu0 0
    %638 = vmatprep.subr.bf16.mxu0 0
    %639 = vmatpush1.bf16.msra.mxu0 0
    %640 = vmatprep.subr.bf16.mxu0 0
    %641 = vmatpush1.bf16.msra.mxu0 0
    %642 = vmatprep.subr.bf16.mxu0 0
    %643 = vmatpush1.bf16.msra.mxu0 0
    %644 = vmatprep.subr.bf16.mxu0 0
    %645 = vmatpush1.bf16.msra.mxu0 0
    %646 = vmatprep.subr.bf16.mxu0 0
    %647 = vmatpush1.bf16.msra.mxu0 0
    %648 = vmatprep.subr.bf16.mxu0 0
    %649 = vmatpush1.bf16.msra.mxu0 0
    %650 = vmatprep.subr.bf16.mxu0 0
    %651 = vmatpush1.bf16.msra.mxu0 0
    %652 = vmatprep.subr.bf16.mxu0 0
    %653 = vmatpush1.bf16.msra.mxu0 0
    %654 = vmatprep.subr.bf16.mxu0 0
    %655 = vmatpush1.bf16.msra.mxu0 0
    %656 = vmatprep.subr.bf16.mxu0 0
    %657 = vmatpush1.bf16.msra.mxu0 0
    %658 = vmatprep.subr.bf16.mxu0 0
    %659 = vmatpush1.bf16.msra.mxu0 0
    %660 = vmatprep.subr.bf16.mxu0 0
    %661 = vmatpush1.bf16.msra.mxu0 0
    %662 = vmatprep.mubr.bf16.mxu0 0
    %663 = vmatmul.mubr.bf16.gmra.mrb[0].mxu0 %v626
    %v664 = vpop.f32.mrb[0].mxu0
    %v665 = vadd.f32 0.0, %v664
    %v666 = vpop.f32.mrb[0].mxu0
    %v667 = vpop.f32.mrb[0].mxu0
    %v668 = vpop.f32.mrb[0].mxu0
    %669 = vdwg.mxu0
    %v671 = vsel %vm40, %v485, 0
    %v673 = vsel %vm492, %v36, 0
    %675 = vmatprep.subr.bf16.mxu0 0
    %676 = vmatpush1.bf16.msra.mxu0 %v673
    %677 = vmatprep.subr.bf16.mxu0 0
    %678 = vmatpush1.bf16.msra.mxu0 0
    %679 = vmatprep.subr.bf16.mxu0 0
    %680 = vmatpush1.bf16.msra.mxu0 0
    %681 = vmatprep.subr.bf16.mxu0 0
    %682 = vmatpush1.bf16.msra.mxu0 0
    %683 = vmatprep.subr.bf16.mxu0 0
    %684 = vmatpush1.bf16.msra.mxu0 0
    %685 = vmatprep.subr.bf16.mxu0 0
    %686 = vmatpush1.bf16.msra.mxu0 0
    %687 = vmatprep.subr.bf16.mxu0 0
    %688 = vmatpush1.bf16.msra.mxu0 0
    %689 = vmatprep.subr.bf16.mxu0 0
    %690 = vmatpush1.bf16.msra.mxu0 0
    %691 = vmatprep.subr.bf16.mxu0 0
    %692 = vmatpush1.bf16.msra.mxu0 0
    %693 = vmatprep.subr.bf16.mxu0 0
    %694 = vmatpush1.bf16.msra.mxu0 0
    %695 = vmatprep.subr.bf16.mxu0 0
    %696 = vmatpush1.bf16.msra.mxu0 0
    %697 = vmatprep.subr.bf16.mxu0 0
    %698 = vmatpush1.bf16.msra.mxu0 0
    %699 = vmatprep.subr.bf16.mxu0 0
    %700 = vmatpush1.bf16.msra.mxu0 0
    %701 = vmatprep.subr.bf16.mxu0 0
    %702 = vmatpush1.bf16.msra.mxu0 0
    %703 = vmatprep.subr.bf16.mxu0 0
    %704 = vmatpush1.bf16.msra.mxu0 0
    %705 = vmatprep.subr.bf16.mxu0 0
    %706 = vmatpush1.bf16.msra.mxu0 0
    %707 = vmatprep.mubr.bf16.mxu0 0
    %708 = vmatmul.mubr.bf16.gmra.mrb[0].mxu0 %v671
    %v709 = vpop.f32.mrb[0].mxu0
    %v710 = vadd.f32 0.0, %v709
    %v711 = vpop.f32.mrb[0].mxu0
    %v712 = vpop.f32.mrb[0].mxu0
    %v713 = vpop.f32.mrb[0].mxu0
    %714 = vdwg.mxu0
    %v716 = vsel %vm40, %v486, 0
    %v718 = vsel %vm492, %v37, 0
    %720 = vmatprep.subr.bf16.mxu0 0
    %721 = vmatpush1.bf16.msra.mxu0 %v718
    %722 = vmatprep.subr.bf16.mxu0 0
    %723 = vmatpush1.bf16.msra.mxu0 0
    %724 = vmatprep.subr.bf16.mxu0 0
    %725 = vmatpush1.bf16.msra.mxu0 0
    %726 = vmatprep.subr.bf16.mxu0 0
    %727 = vmatpush1.bf16.msra.mxu0 0
    %728 = vmatprep.subr.bf16.mxu0 0
    %729 = vmatpush1.bf16.msra.mxu0 0
    %730 = vmatprep.subr.bf16.mxu0 0
    %731 = vmatpush1.bf16.msra.mxu0 0
    %732 = vmatprep.subr.bf16.mxu0 0
    %733 = vmatpush1.bf16.msra.mxu0 0
    %734 = vmatprep.subr.bf16.mxu0 0
    %735 = vmatpush1.bf16.msra.mxu0 0
    %736 = vmatprep.subr.bf16.mxu0 0
    %737 = vmatpush1.bf16.msra.mxu0 0
    %738 = vmatprep.subr.bf16.mxu0 0
    %739 = vmatpush1.bf16.msra.mxu0 0
    %740 = vmatprep.subr.bf16.mxu0 0
    %741 = vmatpush1.bf16.msra.mxu0 0
    %742 = vmatprep.subr.bf16.mxu0 0
    %743 = vmatpush1.bf16.msra.mxu0 0
    %744 = vmatprep.subr.bf16.mxu0 0
    %745 = vmatpush1.bf16.msra.mxu0 0
    %746 = vmatprep.subr.bf16.mxu0 0
    %747 = vmatpush1.bf16.msra.mxu0 0
    %748 = vmatprep.subr.bf16.mxu0 0
    %749 = vmatpush1.bf16.msra.mxu0 0
    %750 = vmatprep.subr.bf16.mxu0 0
    %751 = vmatpush1.bf16.msra.mxu0 0
    %752 = vmatprep.mubr.bf16.mxu0 0
    %753 = vmatmul.mubr.bf16.gmra.mrb[0].mxu0 %v716
    %v754 = vpop.f32.mrb[0].mxu0
    %v755 = vadd.f32 0.0, %v754
    %v756 = vpop.f32.mrb[0].mxu0
    %v757 = vpop.f32.mrb[0].mxu0
    %v758 = vpop.f32.mrb[0].mxu0
    %759 = vdwg.mxu0
    %v761 = vsel %vm40, %v487, 0
    %v763 = vsel %vm492, %v38, 0
    %765 = vmatprep.subr.bf16.mxu0 0
    %766 = vmatpush1.bf16.msra.mxu0 %v763
    %767 = vmatprep.subr.bf16.mxu0 0
    %768 = vmatpush1.bf16.msra.mxu0 0
    %769 = vmatprep.subr.bf16.mxu0 0
    %770 = vmatpush1.bf16.msra.mxu0 0
    %771 = vmatprep.subr.bf16.mxu0 0
    %772 = vmatpush1.bf16.msra.mxu0 0
    %773 = vmatprep.subr.bf16.mxu0 0
    %774 = vmatpush1.bf16.msra.mxu0 0
    %775 = vmatprep.subr.bf16.mxu0 0
    %776 = vmatpush1.bf16.msra.mxu0 0
    %777 = vmatprep.subr.bf16.mxu0 0
    %778 = vmatpush1.bf16.msra.mxu0 0
    %779 = vmatprep.subr.bf16.mxu0 0
    %780 = vmatpush1.bf16.msra.mxu0 0
    %781 = vmatprep.subr.bf16.mxu0 0
    %782 = vmatpush1.bf16.msra.mxu0 0
    %783 = vmatprep.subr.bf16.mxu0 0
    %784 = vmatpush1.bf16.msra.mxu0 0
    %785 = vmatprep.subr.bf16.mxu0 0
    %786 = vmatpush1.bf16.msra.mxu0 0
    %787 = vmatprep.subr.bf16.mxu0 0
    %788 = vmatpush1.bf16.msra.mxu0 0
    %789 = vmatprep.subr.bf16.mxu0 0
    %790 = vmatpush1.bf16.msra.mxu0 0
    %791 = vmatprep.subr.bf16.mxu0 0
    %792 = vmatpush1.bf16.msra.mxu0 0
    %793 = vmatprep.subr.bf16.mxu0 0
    %794 = vmatpush1.bf16.msra.mxu0 0
    %795 = vmatprep.subr.bf16.mxu0 0
    %796 = vmatpush1.bf16.msra.mxu0 0
    %797 = vmatprep.mubr.bf16.mxu0 0
    %798 = vmatmul.mubr.bf16.gmra.mrb[0].mxu0 %v761
    %v799 = vpop.f32.mrb[0].mxu0
    %v800 = vadd.f32 0.0, %v799
    %v801 = vpop.f32.mrb[0].mxu0
    %v802 = vpop.f32.mrb[0].mxu0
    %v803 = vpop.f32.mrb[0].mxu0
    %804 = vdwg.mxu0
    %v806 = vsel %vm40, %v488, 0
    %v808 = vsel %vm492, %v39, 0
    %810 = vmatprep.subr.bf16.mxu0 0
    %811 = vmatpush1.bf16.msra.mxu0 %v808
    %812 = vmatprep.subr.bf16.mxu0 0
    %813 = vmatpush1.bf16.msra.mxu0 0
    %814 = vmatprep.subr.bf16.mxu0 0
    %815 = vmatpush1.bf16.msra.mxu0 0
    %816 = vmatprep.subr.bf16.mxu0 0
    %817 = vmatpush1.bf16.msra.mxu0 0
    %818 = vmatprep.subr.bf16.mxu0 0
    %819 = vmatpush1.bf16.msra.mxu0 0
    %820 = vmatprep.subr.bf16.mxu0 0
    %821 = vmatpush1.bf16.msra.mxu0 0
    %822 = vmatprep.subr.bf16.mxu0 0
    %823 = vmatpush1.bf16.msra.mxu0 0
    %824 = vmatprep.subr.bf16.mxu0 0
    %825 = vmatpush1.bf16.msra.mxu0 0
    %826 = vmatprep.subr.bf16.mxu0 0
    %827 = vmatpush1.bf16.msra.mxu0 0
    %828 = vmatprep.subr.bf16.mxu0 0
    %829 = vmatpush1.bf16.msra.mxu0 0
    %830 = vmatprep.subr.bf16.mxu0 0
    %831 = vmatpush1.bf16.msra.mxu0 0
    %832 = vmatprep.subr.bf16.mxu0 0
    %833 = vmatpush1.bf16.msra.mxu0 0
    %834 = vmatprep.subr.bf16.mxu0 0
    %835 = vmatpush1.bf16.msra.mxu0 0
    %836 = vmatprep.subr.bf16.mxu0 0
    %837 = vmatpush1.bf16.msra.mxu0 0
    %838 = vmatprep.subr.bf16.mxu0 0
    %839 = vmatpush1.bf16.msra.mxu0 0
    %840 = vmatprep.subr.bf16.mxu0 0
    %841 = vmatpush1.bf16.msra.mxu0 0
    %842 = vmatprep.mubr.bf16.mxu0 0
    %843 = vmatmul.mubr.bf16.gmra.mrb[0].mxu0 %v806
    %v844 = vpop.f32.mrb[0].mxu0
    %v845 = vadd.f32 0.0, %v844
    %v846 = vpop.f32.mrb[0].mxu0
    %v847 = vpop.f32.mrb[0].mxu0
    %v848 = vpop.f32.mrb[0].mxu0
    %849 = vdwg.mxu0
    %854 = vrot.lane.b32.xlu0 %v575, 8
    %v855 = vpop.permute.xlu0 %854
    %856 = vrot.lane.b32.xlu0 %v665, 8
    %v857 = vpop.permute.xlu0 %856
    %858 = vrot.lane.b32.xlu0 %v755, 8
    %v859 = vpop.permute.xlu0 %858
    %860 = vrot.lane.b32.xlu0 %v845, 8
    %v861 = vpop.permute.xlu0 %860
    %v866 = vsel %vm40, %v530, %v855
    %v867 = vsel %vm40, %v620, %v857
    %v868 = vsel %vm40, %v710, %v859
    %v869 = vsel %vm40, %v800, %v861
    %vm870 = vcmask 130048
    %871 = vst.msk [vmem:[#allocation5] sm:$0xff] %vm870, %v866
    %872 = vst.msk [vmem:[#allocation5 + $0x8] sm:$0xff] %vm870, %v867
    %873 = vst.msk [vmem:[#allocation5 + $0x10] sm:$0xff] %vm870, %v868
    %874 = vst.msk [vmem:[#allocation5 + $0x18] sm:$0xff] %vm870, %v869
    // Predicated region
    $region10: #{tpu_custom_call.1} parent=1 // pred_check
      _
    $region11: #{tpu_custom_call.1} parent=1 // pred_check_branch
      %876 = sbr.rel (0) target = $region13
    $region12: #{tpu_custom_call.1} parent=1 // pred_region
      %s878 = ssub.s32 512, 512
      %879 = vsyncadd [#allocation4], %s878
      %s880 = sshll.u32 [#allocation5], 4
      %s881 = int_to_ptr.vmem [resolvable:$true] %s880
      %886 = dma.vmem_to_hbm [thread:$0]  %s881, 512, %s1, [#allocation4], 128, 128, 8
    $region13: #{tpu_custom_call.1} parent=1 // pred_fallthru
      _
    // Predicated region
    $region14: #{tpu_custom_call.1} parent=1 // pred_check
      _
    $region15: #{tpu_custom_call.1} parent=1 // pred_check_branch
      %888 = sbr.rel (0) target = $region17
    $region16: #{tpu_custom_call.1} parent=1 // pred_region
      %889 = dma.done [#allocation4], 512
    $region17: #{tpu_custom_call.1} parent=1 // pred_fallthru
      _
    %890 = vsyncpa [#allocation3], 1
    %891 = vsyncpa [#allocation4], 1

</llo_original>
